<compile_context>
chip_gen: v5e
topology: v5e:2x2
jax: 0.10.0
libtpu: 0.0.40
codegen_flags: <defaults>
</compile_context>

<pallas_src>
import functools

import jax
import jax.numpy as jnp
from jax.experimental import pallas as pl
from jax.experimental.pallas import tpu as pltpu

BN_EPS = 1e-5
LANE = 128                       # pad feature/hidden dims to a multiple of the lane width
SUBLANE = 8
DEFAULT_NODE_TILE = 1024         # v7x-safe; v6e/v5e can pass node_tile=2048
DEFAULT_VMEM_LIMIT = 48 * 1024 * 1024   # < v7x 64 MiB physical; v6e/v5e may raise further


def _round_up(v, m):
    return ((v + m - 1) // m) * m


# --------------------------------------------------------------------------------------
# Pass 1: (A + (1+eps)I) @ X (bf16 MXU, f32 acc, reduced over src tiles)
#         + Linear1 + masked BN1 partial statistics
# --------------------------------------------------------------------------------------
def _agg_linear1_kernel(n_valid, tm, apply_w1, *refs):
    if apply_w1:
        adj_ref, xsrc_ref, w1_ref, b1_ref, h1_ref, s1_ref, q1_ref, acc_ref = refs
    else:
        # W1 was folded into X wrapper-side (f_pad > h_pad case); no W1 input.
        adj_ref, xsrc_ref, b1_ref, h1_ref, s1_ref, q1_ref, acc_ref = refs
        w1_ref = None

    # Grid positions read ONCE at the top level (never inside pl.when branches).
    i = pl.program_id(0)
    k = pl.program_id(1)
    k_last = pl.num_programs(1) - 1
    row = jax.lax.broadcasted_iota(jnp.int32, (tm, 1), 0) + i * tm
    valid = (row < n_valid).astype(jnp.float32)   # mask padded rows out of BN stats

    @pl.when(k == 0)
    def _init():
        acc_ref[...] = jnp.zeros_like(acc_ref)

    # Native bf16 x bf16 MXU matmul, f32 accumulator.
    acc_ref[...] += jnp.dot(adj_ref[...], xsrc_ref[...],
                            preferred_element_type=jnp.float32)

    @pl.when(k == k_last)
    def _finalize():
        acc = acc_ref[...]
        if apply_w1:
            h1 = jnp.dot(acc, w1_ref[...],
                         preferred_element_type=jnp.float32) + b1_ref[...]
        else:
            h1 = acc + b1_ref[...]
        h1_ref[...] = h1.astype(h1_ref.dtype)      # bf16 intermediate (mem-bound pass 2)
        h1m = h1 * valid
        s1_ref[...] = jnp.sum(h1m, axis=0, keepdims=True).reshape(1, 1, h1m.shape[1])
        q1_ref[...] = jnp.sum(h1m * h1m, axis=0, keepdims=True).reshape(1, 1, h1m.shape[1])


# --------------------------------------------------------------------------------------
# Pass 2: apply BN1 affine + Linear2 + masked BN2 partial statistics
# --------------------------------------------------------------------------------------
def _bn1_linear2_kernel(n_valid, tm,
                        h1_ref, sc1_ref, sh1_ref, w2_ref, b2_ref,
                        h2_ref, s2_ref, q2_ref):
    i = pl.program_id(0)
    row = jax.lax.broadcasted_iota(jnp.int32, (tm, 1), 0) + i * tm
    valid = (row < n_valid).astype(jnp.float32)

    h1n = h1_ref[...].astype(jnp.float32) * sc1_ref[...] + sh1_ref[...]
    h2 = jnp.dot(h1n, w2_ref[...], preferred_element_type=jnp.float32) + b2_ref[...]
    h2_ref[...] = h2.astype(h2_ref.dtype)
    h2m = h2 * valid
    s2_ref[...] = jnp.sum(h2m, axis=0, keepdims=True).reshape(1, 1, h2m.shape[1])
    q2_ref[...] = jnp.sum(h2m * h2m, axis=0, keepdims=True).reshape(1, 1, h2m.shape[1])


def gin_wrapper_forward(x, edge_index, edge_weight, params, node_tile=None,
                        vmem_limit_bytes=DEFAULT_VMEM_LIMIT, adj_buffers=None):
    """Pallas implementation of GINWrapper.forward (training-mode BatchNorm).

    x:           [N, F_in] float32 node features
    edge_index:  [2, E] int32 (row 0 = source j, row 1 = target i)
    edge_weight: [E] float32 (ignored, matching GINWrapperConv.message)
    node_tile:   row/src tile size (multiples of 128 for multi-tile graphs).
                 v7x: keep ceil(N/node_tile) >= 2 so both TensorCores get work.
    adj_buffers: optional pipeline depth for the adjacency stream (e.g. 3 on v5e).
    """
    del edge_weight  # GINWrapperConv.message(x_j) ignores edge_weight.

    n, f_in = x.shape
    h_dim = params["w1"].shape[1]
    f_pad = _round_up(f_in, LANE)
    h_pad = _round_up(h_dim, LANE)

    if node_tile is None:
        node_tile = DEFAULT_NODE_TILE
    n_sub = _round_up(n, SUBLANE)
    if node_tile >= n_sub:
        tm = n_sub                       # single tile covering the whole (padded) graph
    else:
        tm = _round_up(node_tile, LANE)  # multi-tile: adjacency block last dim lane-aligned
    tk = tm
    n_pad = _round_up(n, tm)
    rt = n_pad // tm
    kt = n_pad // tk

    eps = params["eps"][0]

    # ---- adjacency built directly in bf16 (integer counts <= 256 exact), with the
    #      (1+eps) self term folded onto the diagonal (exact for eps = 0, the default) ----
    src = edge_index[0]
    dst = edge_index[1]
    adj = jnp.zeros((n_pad, n_pad), jnp.bfloat16)
    adj = adj.at[dst, src].add(jnp.ones_like(dst, dtype=jnp.bfloat16))
    diag = jnp.arange(n)
    adj = adj.at[diag, diag].add(jnp.full((n,), 1.0 + eps, dtype=jnp.bfloat16))

    # ---- padded parameters (f32) ----
    w1 = jnp.zeros((f_pad, h_pad), jnp.float32).at[:f_in, :h_dim].set(params["w1"])
    b1 = jnp.zeros((1, h_pad), jnp.float32).at[:, :h_dim].set(params["b1"])
    w2 = jnp.zeros((h_pad, h_pad), jnp.float32).at[:h_dim, :h_dim].set(params["w2"])
    b2 = jnp.zeros((1, h_pad), jnp.float32).at[:, :h_dim].set(params["b2"])
    g1 = jnp.zeros((1, h_pad), jnp.float32).at[:, :h_dim].set(params["gamma1"])
    be1 = jnp.zeros((1, h_pad), jnp.float32).at[:, :h_dim].set(params["beta1"])
    g2 = jnp.zeros((1, h_pad), jnp.float32).at[:, :h_dim].set(params["gamma2"])
    be2 = jnp.zeros((1, h_pad), jnp.float32).at[:, :h_dim].set(params["beta2"])

    x_pad = jnp.zeros((n_pad, f_pad), jnp.float32).at[:n, :f_in].set(x)

    # (A@X)@W1 == A@(X@W1): aggregate at min(f_pad, h_pad) feature width.
    apply_w1 = f_pad <= h_pad
    if apply_w1:
        x_agg = x_pad
        agg_w = f_pad
    else:
        x_agg = x_pad @ w1           # cheap O(N*F*H) pre-projection, shrinks the O(N^2) pass
        agg_w = h_pad
    x_agg = x_agg.astype(jnp.bfloat16)   # bf16 MXU operand

    cparams_2d = pltpu.CompilerParams(
        dimension_semantics=("parallel", "arbitrary"),   # reduction axis last
        vmem_limit_bytes=vmem_limit_bytes)
    cparams_1d = pltpu.CompilerParams(
        dimension_semantics=("parallel",),
        vmem_limit_bytes=vmem_limit_bytes)

    # ---- pass 1: aggregation + Linear1 (+ masked BN1 partial stats) ----
    if adj_buffers is None:
        adj_spec = pl.BlockSpec((tm, tk), lambda i, k: (i, k))
    else:
        # v5e: adj_buffers=3 triple-buffers the HBM-bound adjacency stream.
        adj_spec = pl.BlockSpec((tm, tk), lambda i, k: (i, k),
                                pipeline_mode=pl.Buffered(adj_buffers))

    in_specs = [adj_spec,
                pl.BlockSpec((tk, agg_w), lambda i, k: (k, 0))]   # x (src rows, bf16)
    args = [adj, x_agg]
    if apply_w1:
        in_specs.append(pl.BlockSpec((agg_w, h_pad), lambda i, k: (0, 0)))  # W1 resident
        args.append(w1)
    in_specs.append(pl.BlockSpec((1, h_pad), lambda i, k: (0, 0)))          # b1
    args.append(b1)

    h1, s1, q1 = pl.pallas_call(
        functools.partial(_agg_linear1_kernel, n, tm, apply_w1),
        out_shape=(
            jax.ShapeDtypeStruct((n_pad, h_pad), jnp.bfloat16),   # h1 (bf16 intermediate)
            jax.ShapeDtypeStruct((rt, 1, h_pad), jnp.float32),    # per-tile column sums
            jax.ShapeDtypeStruct((rt, 1, h_pad), jnp.float32),    # per-tile sum of squares
        ),
        grid_spec=pltpu.PrefetchScalarGridSpec(
            num_scalar_prefetch=0,
            grid=(rt, kt),
            in_specs=in_specs,
            out_specs=[
                pl.BlockSpec((tm, h_pad), lambda i, k: (i, 0)),
                pl.BlockSpec((1, 1, h_pad), lambda i, k: (i, 0, 0)),
                pl.BlockSpec((1, 1, h_pad), lambda i, k: (i, 0, 0)),
            ],
            scratch_shapes=[pltpu.VMEM((tm, agg_w), jnp.float32)],  # f32 accumulator
        ),
        compiler_params=cparams_2d,
    )(*args)

    # BN1 global training-mode stats (biased variance) from per-tile partials.
    mu1 = jnp.sum(s1[:, 0, :], axis=0, keepdims=True) / n
    var1 = jnp.maximum(jnp.sum(q1[:, 0, :], axis=0, keepdims=True) / n - mu1 * mu1, 0.0)
    sc1 = g1 * jax.lax.rsqrt(var1 + BN_EPS)
    sh1 = be1 - mu1 * sc1

    # ---- pass 2: BN1 affine -> Linear2 (+ masked BN2 partial stats) ----
    h2, s2, q2 = pl.pallas_call(
        functools.partial(_bn1_linear2_kernel, n, tm),
        out_shape=(
            jax.ShapeDtypeStruct((n_pad, h_pad), jnp.bfloat16),   # h2 (bf16 intermediate)
            jax.ShapeDtypeStruct((rt, 1, h_pad), jnp.float32),
            jax.ShapeDtypeStruct((rt, 1, h_pad), jnp.float32),
        ),
        grid_spec=pltpu.PrefetchScalarGridSpec(
            num_scalar_prefetch=0,
            grid=(rt,),
            in_specs=[
                pl.BlockSpec((tm, h_pad), lambda i: (i, 0)),        # h1 (bf16)
                pl.BlockSpec((1, h_pad), lambda i: (0, 0)),         # BN1 scale
                pl.BlockSpec((1, h_pad), lambda i: (0, 0)),         # BN1 shift
                pl.BlockSpec((h_pad, h_pad), lambda i: (0, 0)),     # W2
                pl.BlockSpec((1, h_pad), lambda i: (0, 0)),         # b2
            ],
            out_specs=[
                pl.BlockSpec((tm, h_pad), lambda i: (i, 0)),
                pl.BlockSpec((1, 1, h_pad), lambda i: (i, 0, 0)),
                pl.BlockSpec((1, 1, h_pad), lambda i: (i, 0, 0)),
            ],
        ),
        compiler_params=cparams_1d,
    )(h1, sc1, sh1, w2, b2)

    mu2 = jnp.sum(s2[:, 0, :], axis=0, keepdims=True) / n
    var2 = jnp.maximum(jnp.sum(q2[:, 0, :], axis=0, keepdims=True) / n - mu2 * mu2, 0.0)
    sc2 = g2 * jax.lax.rsqrt(var2 + BN_EPS)
    sh2 = be2 - mu2 * sc2

    # BN2 affine is a single per-column FMA: let XLA fuse it with the unpad slice
    # (saves a third kernel launch and an extra N x H HBM round-trip).
    out = h2[:n, :h_dim].astype(jnp.float32) * sc2[:, :h_dim] + sh2[:, :h_dim]
    return out


def init_params(key, in_channels, out_channels):
    k1, k2, k3, k4, k5, k6, k7, k8 = jax.random.split(key, 8)
    s1 = 1.0 / jnp.sqrt(in_channels)
    s2 = 1.0 / jnp.sqrt(out_channels)
    return {
        "eps": jnp.zeros((1,), jnp.float32),  # GIN eps buffer (default 0.0)
        "w1": jax.random.uniform(k1, (in_channels, out_channels), jnp.float32, -s1, s1),
        "b1": jax.random.uniform(k2, (1, out_channels), jnp.float32, -s1, s1),
        "gamma1": 1.0 + 0.1 * jax.random.normal(k3, (1, out_channels), jnp.float32),
        "beta1": 0.1 * jax.random.normal(k4, (1, out_channels), jnp.float32),
        "w2": jax.random.uniform(k5, (out_channels, out_channels), jnp.float32, -s2, s2),
        "b2": jax.random.uniform(k6, (1, out_channels), jnp.float32, -s2, s2),
        "gamma2": 1.0 + 0.1 * jax.random.normal(k7, (1, out_channels), jnp.float32),
        "beta2": 0.1 * jax.random.normal(k8, (1, out_channels), jnp.float32),
    }


def reference_forward(x, edge_index, edge_weight, params):
    """Pure-JAX f32 reference mirroring the PyTorch forward (training-mode BN)."""
    del edge_weight
    n = x.shape[0]
    adj = jnp.zeros((n, n), jnp.float32).at[edge_index[1], edge_index[0]].add(1.0)
    h = adj @ x + (1.0 + params["eps"][0]) * x
    h1 = h @ params["w1"] + params["b1"]
    mu1 = h1.mean(0, keepdims=True)
    v1 = ((h1 - mu1) ** 2).mean(0, keepdims=True)
    h1 = (h1 - mu1) / jnp.sqrt(v1 + BN_EPS) * params["gamma1"] + params["beta1"]
    h2 = h1 @ params["w2"] + params["b2"]
    mu2 = h2.mean(0, keepdims=True)
    v2 = ((h2 - mu2) ** 2).mean(0, keepdims=True)
    return (h2 - mu2) / jnp.sqrt(v2 + BN_EPS) * params["gamma2"] + params["beta2"]


if __name__ == "__main__":
    key = jax.random.PRNGKey(0)
    k_x, k_e, k_w, k_p, k_x2, k_e2, k_w2 = jax.random.split(key, 7)

    in_channels, out_channels = 32, 32
    params = init_params(k_p, in_channels, out_channels)

    # Tolerance reflects the bf16 aggregation operands and bf16 h1/h2 intermediates.
    ATOL = RTOL = 2e-2

    # --- tiny graph: single-tile path (blocks equal the full padded arrays) ---
    n1, e1 = 20, 60
    x1 = jax.random.normal(k_x, (n1, in_channels), jnp.float32)
    ei1 = jax.random.randint(k_e, (2, e1), 0, n1, jnp.int32)
    ew1 = jax.random.uniform(k_w, (e1,), jnp.float32)

    out1 = jax.block_until_ready(gin_wrapper_forward(x1, ei1, ew1, params))
    ref1 = reference_forward(x1, ei1, ew1, params)
    assert out1.shape == (n1, out_channels)
    assert jnp.allclose(out1, ref1, atol=ATOL, rtol=RTOL), "tiny-graph mismatch vs reference"

    # --- larger graph: exercises the (row-tile x src-reduction) grid, masking, padding ---
    n2, e2 = 300, 900
    x2 = jax.random.normal(k_x2, (n2, in_channels), jnp.float32)
    ei2 = jax.random.randint(k_e2, (2, e2), 0, n2, jnp.int32)
    ew2 = jax.random.uniform(k_w2, (e2,), jnp.float32)

    out2 = jax.block_until_ready(
        gin_wrapper_forward(x2, ei2, ew2, params, node_tile=128))
    ref2 = reference_forward(x2, ei2, ew2, params)
    assert out2.shape == (n2, out_channels)
    assert jnp.allclose(out2, ref2, atol=ATOL, rtol=RTOL), "tiled-graph mismatch vs reference"

    print("KERNEL_OK")
</pallas_src>

<mosaic_0001>
module attributes {stable_mosaic.version = 11 : i64} {
  func.func @_agg_linear1_kernel(%arg0: i32, %arg1: i32, %arg2: memref<24x24xbf16, #tpu.memory_space<vmem>>, %arg3: memref<24x128xbf16, #tpu.memory_space<vmem>>, %arg4: memref<128x128xf32, #tpu.memory_space<vmem>>, %arg5: memref<1x128xf32, #tpu.memory_space<vmem>>, %arg6: memref<24x128xbf16, #tpu.memory_space<vmem>>, %arg7: memref<1x1x128xf32, #tpu.memory_space<vmem>>, %arg8: memref<1x1x128xf32, #tpu.memory_space<vmem>>, %arg9: memref<24x128xf32, #tpu.memory_space<vmem>>) attributes {dimension_semantics = [#tpu.dimension_semantics<parallel>, #tpu.dimension_semantics<arbitrary>], iteration_bounds = array<i64: 1, 1>, scalar_prefetch = 0 : i64, scratch_operands = 1 : i64, tpu.core_type = #tpu.core_type<tc>, window_params = [{transform_indices = @transform_0, window_bounds = array<i64: 24, 24>}, {transform_indices = @transform_1, window_bounds = array<i64: 24, 128>}, {pipeline_mode = #tpu.pipeline_mode<synchronous>, transform_indices = @transform_2, window_bounds = array<i64: 128, 128>}, {pipeline_mode = #tpu.pipeline_mode<synchronous>, transform_indices = @transform_3, window_bounds = array<i64: 1, 128>}, {transform_indices = @transform_4, window_bounds = array<i64: 24, 128>}, {transform_indices = @transform_5, window_bounds = array<i64: 1, 1, 128>}, {transform_indices = @transform_6, window_bounds = array<i64: 1, 1, 128>}]} {
    %0 = tpu.iota {dimensions = array<i32: 0>} : vector<24x1xi32>
    %c24_i32 = arith.constant 24 : i32
    %1 = arith.muli %arg0, %c24_i32 : i32
    %2 = vector.broadcast %1 : i32 to vector<24x1xi32>
    %3 = arith.addi %0, %2 : vector<24x1xi32>
    %c20_i32 = arith.constant 20 : i32
    %4 = vector.broadcast %c20_i32 : i32 to vector<24x1xi32>
    %5 = arith.cmpi slt, %3, %4 : vector<24x1xi32>
    %6 = arith.extui %5 : vector<24x1xi1> to vector<24x1xi32>
    %7 = arith.sitofp %6 : vector<24x1xi32> to vector<24x1xf32>
    %c0_i32 = arith.constant 0 : i32
    %8 = arith.cmpi eq, %arg1, %c0_i32 : i32
    %9 = arith.extui %8 : i1 to i32
    %c0_i32_0 = arith.constant 0 : i32
    %10 = arith.cmpi ne, %9, %c0_i32_0 : i32
    scf.if %10 {
      %cst_10 = arith.constant 0.000000e+00 : f32
      %20 = vector.broadcast %cst_10 : f32 to vector<24x128xf32>
      %c0_11 = arith.constant 0 : index
      %c0_12 = arith.constant 0 : index
      %21 = vector.load %arg9[%c0_11, %c0_12] : memref<24x128xf32, #tpu.memory_space<vmem>>, vector<24x128xf32>
      tpu.vector_store %arg9[%c0_11, %c0_12], %20 {strides = array<i32>} : memref<24x128xf32, #tpu.memory_space<vmem>>, vector<24x128xf32>,
    } else {
    }
    %c0 = arith.constant 0 : index
    %c0_1 = arith.constant 0 : index
    %11 = vector.load %arg9[%c0, %c0_1] : memref<24x128xf32, #tpu.memory_space<vmem>>, vector<24x128xf32>
    %c0_2 = arith.constant 0 : index
    %c0_3 = arith.constant 0 : index
    %12 = vector.load %arg2[%c0_2, %c0_3] : memref<24x24xbf16, #tpu.memory_space<vmem>>, vector<24x24xbf16>
    %c0_4 = arith.constant 0 : index
    %c0_5 = arith.constant 0 : index
    %13 = vector.load %arg3[%c0_4, %c0_5] : memref<24x128xbf16, #tpu.memory_space<vmem>>, vector<24x128xbf16>
    %cst = arith.constant dense<0.000000e+00> : vector<24x128xf32>
    %14 = tpu.matmul %12, %13, %cst {dimension_numbers = #tpu.dot_dimension_numbers<[1], [0], [0], [1], [0, 0, 1, 1], [], []>} : vector<24x24xbf16>, vector<24x128xbf16>, vector<24x128xf32> -> vector<24x128xf32>
    %15 = arith.addf %11, %14 : vector<24x128xf32>
    %c0_6 = arith.constant 0 : index
    %c0_7 = arith.constant 0 : index
    %16 = vector.load %arg9[%c0_6, %c0_7] : memref<24x128xf32, #tpu.memory_space<vmem>>, vector<24x128xf32>
    tpu.vector_store %arg9[%c0_6, %c0_7], %15 {strides = array<i32>} : memref<24x128xf32, #tpu.memory_space<vmem>>, vector<24x128xf32>,
    %c0_i32_8 = arith.constant 0 : i32
    %17 = arith.cmpi eq, %arg1, %c0_i32_8 : i32
    %18 = arith.extui %17 : i1 to i32
    %c0_i32_9 = arith.constant 0 : i32
    %19 = arith.cmpi ne, %18, %c0_i32_9 : i32
    scf.if %19 {
      %c0_10 = arith.constant 0 : index
      %c0_11 = arith.constant 0 : index
      %20 = vector.load %arg9[%c0_10, %c0_11] : memref<24x128xf32, #tpu.memory_space<vmem>>, vector<24x128xf32>
      %c0_12 = arith.constant 0 : index
      %c0_13 = arith.constant 0 : index
      %21 = vector.load %arg4[%c0_12, %c0_13] : memref<128x128xf32, #tpu.memory_space<vmem>>, vector<128x128xf32>
      %cst_14 = arith.constant dense<0.000000e+00> : vector<24x128xf32>
      %22 = tpu.matmul %20, %21, %cst_14 {dimension_numbers = #tpu.dot_dimension_numbers<[1], [0], [0], [1], [0, 0, 1, 1], [], []>} : vector<24x128xf32>, vector<128x128xf32>, vector<24x128xf32> -> vector<24x128xf32>
      %c0_15 = arith.constant 0 : index
      %c0_16 = arith.constant 0 : index
      %23 = vector.load %arg5[%c0_15, %c0_16] : memref<1x128xf32, #tpu.memory_space<vmem>>, vector<1x128xf32>
      %24 = vector.broadcast %23 : vector<1x128xf32> to vector<24x128xf32>
      %25 = arith.addf %22, %24 : vector<24x128xf32>
      %26 = arith.truncf %25 : vector<24x128xf32> to vector<24x128xbf16>
      %c0_17 = arith.constant 0 : index
      %c0_18 = arith.constant 0 : index
      %27 = vector.load %arg6[%c0_17, %c0_18] : memref<24x128xbf16, #tpu.memory_space<vmem>>, vector<24x128xbf16>
      tpu.vector_store %arg6[%c0_17, %c0_18], %26 {strides = array<i32>} : memref<24x128xbf16, #tpu.memory_space<vmem>>, vector<24x128xbf16>,
      %28 = vector.broadcast %7 : vector<24x1xf32> to vector<24x128xf32>
      %29 = arith.mulf %25, %28 : vector<24x128xf32>
      %cst_19 = arith.constant dense<0.000000e+00> : vector<128xf32>
      %30 = vector.multi_reduction <add>, %29, %cst_19 [0] : vector<24x128xf32> to vector<128xf32>
      %31 = vector.shape_cast %30 : vector<128xf32> to vector<1x128xf32>
      %32 = vector.shape_cast %31 : vector<1x128xf32> to vector<1x1x128xf32>
      %c0_20 = arith.constant 0 : index
      %c0_21 = arith.constant 0 : index
      %c0_22 = arith.constant 0 : index
      %33 = vector.load %arg7[%c0_20, %c0_21, %c0_22] : memref<1x1x128xf32, #tpu.memory_space<vmem>>, vector<1x1x128xf32>
      tpu.vector_store %arg7[%c0_20, %c0_21, %c0_22], %32 {strides = array<i32>} : memref<1x1x128xf32, #tpu.memory_space<vmem>>, vector<1x1x128xf32>,
      %34 = arith.mulf %29, %29 : vector<24x128xf32>
      %cst_23 = arith.constant dense<0.000000e+00> : vector<128xf32>
      %35 = vector.multi_reduction <add>, %34, %cst_23 [0] : vector<24x128xf32> to vector<128xf32>
      %36 = vector.shape_cast %35 : vector<128xf32> to vector<1x128xf32>
      %37 = vector.shape_cast %36 : vector<1x128xf32> to vector<1x1x128xf32>
      %c0_24 = arith.constant 0 : index
      %c0_25 = arith.constant 0 : index
      %c0_26 = arith.constant 0 : index
      %38 = vector.load %arg8[%c0_24, %c0_25, %c0_26] : memref<1x1x128xf32, #tpu.memory_space<vmem>>, vector<1x1x128xf32>
      tpu.vector_store %arg8[%c0_24, %c0_25, %c0_26], %37 {strides = array<i32>} : memref<1x1x128xf32, #tpu.memory_space<vmem>>, vector<1x1x128xf32>,
    } else {
    }
    return
  }
  func.func @transform_0(%arg0: i32, %arg1: i32) -> (i32, i32) {
    %c0_i32 = arith.constant 0 : i32
    return %arg0, %arg1 : i32, i32
  }
  func.func @transform_1(%arg0: i32, %arg1: i32) -> (i32, i32) {
    %c0_i32 = arith.constant 0 : i32
    %c0_i32_0 = arith.constant 0 : i32
    return %arg1, %c0_i32 : i32, i32
  }
  func.func @transform_2(%arg0: i32, %arg1: i32) -> (i32, i32) {
    %c0_i32 = arith.constant 0 : i32
    %c0_i32_0 = arith.constant 0 : i32
    %c0_i32_1 = arith.constant 0 : i32
    return %c0_i32, %c0_i32_0 : i32, i32
  }
  func.func @transform_3(%arg0: i32, %arg1: i32) -> (i32, i32) {
    %c0_i32 = arith.constant 0 : i32
    %c0_i32_0 = arith.constant 0 : i32
    %c0_i32_1 = arith.constant 0 : i32
    return %c0_i32, %c0_i32_0 : i32, i32
  }
  func.func @transform_4(%arg0: i32, %arg1: i32) -> (i32, i32) {
    %c0_i32 = arith.constant 0 : i32
    %c0_i32_0 = arith.constant 0 : i32
    return %arg0, %c0_i32 : i32, i32
  }
  func.func @transform_5(%arg0: i32, %arg1: i32) -> (i32, i32, i32) {
    %c0_i32 = arith.constant 0 : i32
    %c0_i32_0 = arith.constant 0 : i32
    %c0_i32_1 = arith.constant 0 : i32
    return %arg0, %c0_i32, %c0_i32_0 : i32, i32, i32
  }
  func.func @transform_6(%arg0: i32, %arg1: i32) -> (i32, i32, i32) {
    %c0_i32 = arith.constant 0 : i32
    %c0_i32_0 = arith.constant 0 : i32
    %c0_i32_1 = arith.constant 0 : i32
    return %arg0, %c0_i32, %c0_i32_0 : i32, i32, i32
  }
}

</mosaic_0001>

<llo_original>
// kernel: tpu_custom_call.1
$region0: #{tpu_custom_call.1}
  #allocation0 [shape = 'u32[]', space=smem, size = 0x4, offset = 0x4, fixed_abs, tag = 'smem constant byte address 0x4 - core index']
  #allocation1 [shape = 'u32[72,128]{1,0:T(1,128)}', space=vmem, size = 0x9000, scoped, tag = 'internal scratch']
  #allocation2 [shape = 'f32[24,128]{1,0:T(8,128)}', space=vmem, size = 0x3000, scoped, tag = 'scratch operand']
  %s0 = inlined_call_operand.hbm [shape: bf16[24,24], index: 0, kind: input, shape index: {}]
  %s1 = inlined_call_operand.hbm [shape: bf16[24,128], index: 1, kind: input, shape index: {}]
  %s2 = inlined_call_operand.hbm [shape: f32[128,128], index: 2, kind: input, shape index: {}]
  %s3 = inlined_call_operand.vmem [shape: f32[1,128], index: 3, kind: input, shape index: {}]
  %s4 = inlined_call_operand.hbm [shape: bf16[24,128], index: 4, kind: output, shape index: {0}]
  %s5 = inlined_call_operand.hbm [shape: f32[1,1,128], index: 5, kind: output, shape index: {1}]
  %s6 = inlined_call_operand.hbm [shape: f32[1,1,128], index: 6, kind: output, shape index: {2}]
  %7 = xla_tuple %s4, %s5, %s6
  %s8 = sld [smem:[#allocation0]]
  $region62: #{tpu_custom_call.1} parent=0
    _
  %s10 = ssub.s32 1, %s8
  %s11 = scalar_select 0, %s10, %s8
  $region1: #{tpu_custom_call.1} parent=0
    #allocation3 [shape = 'u8[6144]{0}', space=vmem, size = 0x1800, scoped, tag = 'input window, operand 0, single buffered']
    #allocation4 [shape = 's32[1]{0}', space=sflag, size = 0x4, scoped, tag = 'scoped memory for tpu_custom_call.1']
    #allocation5 [shape = 's32[1]{0}', space=sflag, size = 0x4, scoped, tag = 'scoped memory for tpu_custom_call.1']
    #allocation6 [shape = 'u8[6144]{0}', space=vmem, size = 0x1800, scoped, tag = 'input window, operand 1, single buffered']
    #allocation7 [shape = 's32[1]{0}', space=sflag, size = 0x4, scoped, tag = 'scoped memory for tpu_custom_call.1']
    #allocation8 [shape = 'u8[65536]{0}', space=vmem, size = 0x10000, scoped, tag = 'input window, operand 2, single buffered']
    #allocation9 [shape = 'u8[6144]{0}', space=vmem, size = 0x1800, scoped, tag = 'output window, operand 0, single buffered']
    #allocation10 [shape = 'u8[512]{0}', space=vmem, size = 0x400, scoped, tag = 'output window, operand 1, single buffered']
    #allocation11 [shape = 's32[1]{0}', space=sflag, size = 0x4, scoped, tag = 'scoped memory for tpu_custom_call.1']
    #allocation12 [shape = 'u8[512]{0}', space=vmem, size = 0x400, scoped, tag = 'output window, operand 2, single buffered']
    %12 = vsyncpa [#allocation4], 0
    %13 = vsyncpa [#allocation7], 0
    %14 = vsyncpa [#allocation5], 0
    %15 = vsyncpa [#allocation11], 0
    // Predicated region
    $region2: #{tpu_custom_call.1} parent=1 // pred_check
      _
    $region3: #{tpu_custom_call.1} parent=1 // pred_check_branch
      %17 = sbr.rel (0) target = $region5
    $region4: #{tpu_custom_call.1} parent=1 // pred_region
      %19 = vsyncadd [#allocation4], 0
      %s20 = sshll.u32 %s0, 4
      %s21 = int_to_ptr.hbm [resolvable:$true] %s20
      %s22 = sshll.u32 [#allocation3], 4
      %s23 = int_to_ptr.vmem [resolvable:$true] %s22
      %28 = dma.hbm_to_vmem [thread:$0]  %s21, 192, %s23, [#allocation4], 64, 64, 4
    $region5: #{tpu_custom_call.1} parent=1 // pred_fallthru
      _
    // Predicated region
    $region6: #{tpu_custom_call.1} parent=1 // pred_check
      _
    $region7: #{tpu_custom_call.1} parent=1 // pred_check_branch
      %30 = sbr.rel (0) target = $region9
    $region8: #{tpu_custom_call.1} parent=1 // pred_region
      %32 = vsyncadd [#allocation7], 0
      %s33 = sshll.u32 %s1, 4
      %s34 = int_to_ptr.hbm [resolvable:$true] %s33
      %s35 = sshll.u32 [#allocation6], 4
      %s36 = int_to_ptr.vmem [resolvable:$true] %s35
      %41 = dma.hbm_to_vmem [thread:$0]  %s34, 192, %s36, [#allocation7], 64, 64, 4
    $region9: #{tpu_custom_call.1} parent=1 // pred_fallthru
      _
    // Predicated region
    $region10: #{tpu_custom_call.1} parent=1 // pred_check
      _
    $region11: #{tpu_custom_call.1} parent=1 // pred_check_branch
      %43 = sbr.rel (0) target = $region13
    $region12: #{tpu_custom_call.1} parent=1 // pred_region
      %45 = vsyncadd [#allocation7], 0
      %s46 = sshll.u32 %s2, 4
      %s47 = int_to_ptr.hbm [resolvable:$true] %s46
      %s48 = sshll.u32 [#allocation8], 4
      %s49 = int_to_ptr.vmem [resolvable:$true] %s48
      %54 = dma.hbm_to_vmem [thread:$0]  %s47, 2048, %s49, [#allocation7], 128, 128, 8
    $region13: #{tpu_custom_call.1} parent=1 // pred_fallthru
      _
    // Predicated region
    $region14: #{tpu_custom_call.1} parent=1 // pred_check
      _
    $region15: #{tpu_custom_call.1} parent=1 // pred_check_branch
      %56 = sbr.rel (0) target = $region17
    $region16: #{tpu_custom_call.1} parent=1 // pred_region
      _
    $region17: #{tpu_custom_call.1} parent=1 // pred_fallthru
      _
    // Predicated region
    $region18: #{tpu_custom_call.1} parent=1 // pred_check
      _
    $region19: #{tpu_custom_call.1} parent=1 // pred_check_branch
      %58 = sbr.rel (0) target = $region21
    $region20: #{tpu_custom_call.1} parent=1 // pred_region
      %60 = dma.done [#allocation4], 192
    $region21: #{tpu_custom_call.1} parent=1 // pred_fallthru
      _
    // Predicated region
    $region22: #{tpu_custom_call.1} parent=1 // pred_check
      _
    $region23: #{tpu_custom_call.1} parent=1 // pred_check_branch
      %62 = sbr.rel (0) target = $region25
    $region24: #{tpu_custom_call.1} parent=1 // pred_region
      %64 = dma.done [#allocation7], 192
    $region25: #{tpu_custom_call.1} parent=1 // pred_fallthru
      _
    // Predicated region
    $region26: #{tpu_custom_call.1} parent=1 // pred_check
      _
    $region27: #{tpu_custom_call.1} parent=1 // pred_check_branch
      %66 = sbr.rel (0) target = $region29
    $region28: #{tpu_custom_call.1} parent=1 // pred_region
      %68 = dma.done [#allocation7], 2048
    $region29: #{tpu_custom_call.1} parent=1 // pred_fallthru
      _
    %v70 = vlaneseq
    %v71 = vshrl.u32 %v70, 7
    %v72 = vadd.s32 %v71, 8
    %v73 = vadd.s32 %v71, 16
    %s74 = smul.u32 0, 24
    %v75 = vstv %s74
    %v76 = vadd.s32 %v71, %v75
    %v77 = vadd.s32 %v72, %v75
    %v78 = vadd.s32 %v73, %v75
    %vm79 = vcmp.lt.s32.totalorder %v76, 20
    %vm80 = vcmp.lt.s32.totalorder %v77, 20
    %vm81 = vcmp.lt.s32.totalorder %v78, 20
    %v82 = vsel %vm79, 1, 0
    %v83 = vsel %vm80, 1, 0
    %v84 = vsel %vm81, 1, 0
    %v85 = vcvt.s32.f32 %v82
    %v86 = vcvt.s32.f32 %v83
    %v87 = vcvt.s32.f32 %v84
    %p88 = scmp.eq.s32.totalorder 0, 0
    // Predicated region
    $region30: #{tpu_custom_call.1} parent=1 // pred_check
      %p89 = pneg %p88
    $region31: #{tpu_custom_call.1} parent=1 // pred_check_branch
      %91 = sbr.rel (%p89) target = $region33
    $region32: #{tpu_custom_call.1} parent=1 // pred_region
      %92 = vst [vmem:[#allocation2] sm:$0xff] 0.0
      %93 = vst [vmem:[#allocation2 + $0x8] sm:$0xff] 0.0
      %94 = vst [vmem:[#allocation2 + $0x10] sm:$0xff] 0.0
    $region33: #{tpu_custom_call.1} parent=1 // pred_fallthru
      _
    %v95 = vld [vmem:[#allocation2] sm:$0xff]
    %v96 = vld [vmem:[#allocation2 + $0x8] sm:$0xff]
    %v97 = vld [vmem:[#allocation2 + $0x10] sm:$0xff]
    %v98 = vld [vmem:[#allocation3] sm:$0xf]
    %v99 = vld [vmem:[#allocation3 + $0x4] sm:$0xf]
    %v100 = vld [vmem:[#allocation3 + $0x8] sm:$0xf]
    %v101 = vld [vmem:[#allocation6] sm:$0xf]
    %v102 = vld [vmem:[#allocation6 + $0x4] sm:$0xf]
    %v103 = vld [vmem:[#allocation6 + $0x8] sm:$0xf]
    %v107 = vunpack.c.l.b16 %v98
    %v108 = vunpack.c.l.b16 %v99
    %v109 = vunpack.c.l.b16 %v100
    %v110 = vpack.c.b16 %v108, %v107
    %v111 = vpack.c.b16 %v109, %v109
    %v115 = vunpack.c.l.b16 %v101
    %v116 = vunpack.c.l.b16 %v102
    %v117 = vunpack.c.l.b16 %v103
    %v118 = vpack.c.b16 %v116, %v115
    %v119 = vpack.c.b16 %v117, %v117
    %vm121 = vcmask 195584
    %v123 = vsel %vm121, %v110, 0
    %v126 = vsel %vm121, %v111, 0
    %vm128 = vcmask 1043456
    %v130 = vsel %vm128, %v119, 0
    %132 = vmatpush.bf16.msra.mxu0 0
    %133 = vmatpush.bf16.msra.mxu0 0
    %134 = vmatpush.bf16.msra.mxu0 0
    %135 = vmatpush.bf16.msra.mxu0 0
    %136 = vmatpush.bf16.msra.mxu0 0
    %137 = vmatpush.bf16.msra.mxu0 0
    %138 = vmatpush.bf16.msra.mxu0 %v130
    %139 = vmatpush.bf16.msra.mxu0 %v118
    %140 = vmatmul.bf16.gmra.mxu0 %v123
    %v141 = vpop.f32.mrf.mxu0
    %v142 = vadd.f32 0.0, %v141
    %v143 = vpop.f32.mrf.mxu0
    %v144 = vadd.f32 0.0, %v143
    %145 = vmatmul.bf16.gmra.mxu0 %v126
    %v146 = vpop.f32.mrf.mxu0
    %v147 = vadd.f32 0.0, %v146
    %v148 = vpop.f32.mrf.mxu0
    %149 = vdwg.mxu0
    %v150 = vadd.f32 %v95, %v142
    %v151 = vadd.f32 %v96, %v144
    %v152 = vadd.f32 %v97, %v147
    %153 = vst [vmem:[#allocation2] sm:$0xff] %v150
    %154 = vst [vmem:[#allocation2 + $0x8] sm:$0xff] %v151
    %155 = vst [vmem:[#allocation2 + $0x10] sm:$0xff] %v152
    // Predicated region
    $region34: #{tpu_custom_call.1} parent=1 // pred_check
      %p156 = pneg %p88
    $region35: #{tpu_custom_call.1} parent=1 // pred_check_branch
      %158 = sbr.rel (%p156) target = $region37
    $region36: #{tpu_custom_call.1} parent=1 // pred_region
      %v159 = vld [vmem:[#allocation2] sm:$0xff]
      %v160 = vld [vmem:[#allocation2 + $0x8] sm:$0xff]
      %v161 = vld [vmem:[#allocation2 + $0x10] sm:$0xff]
      %v162 = vld [vmem:[#allocation8] sm:$0xff]
      %v163 = vld [vmem:[#allocation8 + $0x8] sm:$0xff]
      %v164 = vld [vmem:[#allocation8 + $0x10] sm:$0xff]
      %v165 = vld [vmem:[#allocation8 + $0x18] sm:$0xff]
      %v166 = vld [vmem:[#allocation8 + $0x20] sm:$0xff]
      %v167 = vld [vmem:[#allocation8 + $0x28] sm:$0xff]
      %v168 = vld [vmem:[#allocation8 + $0x30] sm:$0xff]
      %v169 = vld [vmem:[#allocation8 + $0x38] sm:$0xff]
      %v170 = vld [vmem:[#allocation8 + $0x40] sm:$0xff]
      %v171 = vld [vmem:[#allocation8 + $0x48] sm:$0xff]
      %v172 = vld [vmem:[#allocation8 + $0x50] sm:$0xff]
      %v173 = vld [vmem:[#allocation8 + $0x58] sm:$0xff]
      %v174 = vld [vmem:[#allocation8 + $0x60] sm:$0xff]
      %v175 = vld [vmem:[#allocation8 + $0x68] sm:$0xff]
      %v176 = vld [vmem:[#allocation8 + $0x70] sm:$0xff]
      %v177 = vld [vmem:[#allocation8 + $0x78] sm:$0xff]
      %v178 = vld [vmem:[%s3] sm:$0x1]
      %v180 = vperm.slane %v178, 0
      %182 = vmatpush.msra.mxu0 %v177
      %183 = vmatpush.msra.mxu0 %v176
      %184 = vmatpush.msra.mxu0 %v175
      %185 = vmatpush.msra.mxu0 %v174
      %186 = vmatpush.msra.mxu0 %v173
      %187 = vmatpush.msra.mxu0 %v172
      %188 = vmatpush.msra.mxu0 %v171
      %189 = vmatpush.msra.mxu0 %v170
      %190 = vmatpush.msra.mxu0 %v169
      %191 = vmatpush.msra.mxu0 %v168
      %192 = vmatpush.msra.mxu0 %v167
      %193 = vmatpush.msra.mxu0 %v166
      %194 = vmatpush.msra.mxu0 %v165
      %195 = vmatpush.msra.mxu0 %v164
      %196 = vmatpush.msra.mxu0 %v163
      %197 = vmatpush.msra.mxu0 %v162
      %198 = vmatmul.f32.gmra.mxu0 %v159
      %v199 = vpop.f32.mrf.mxu0
      %v200 = vadd.f32 %v180, %v199
      %201 = vmatmul.f32.gmra.mxu0 %v160
      %v202 = vpop.f32.mrf.mxu0
      %v203 = vadd.f32 %v180, %v202
      %204 = vmatmul.f32.gmra.mxu0 %v161
      %v205 = vpop.f32.mrf.mxu0
      %v206 = vadd.f32 %v180, %v205
      %207 = vdwg.mxu0
      %v208 = vpack.c.bf16 %v200, %v200
      %v209 = vpack.c.bf16 %v203, %v203
      %v210 = vpack.c.bf16 %v206, %v206
      %211 = vst [vmem:[#allocation9] sm:$0xf] %v208
      %212 = vst [vmem:[#allocation9 + $0x4] sm:$0xf] %v209
      %213 = vst [vmem:[#allocation9 + $0x8] sm:$0xf] %v210
      %v214 = vmul.f32 %v200, %v85
      %v215 = vmul.f32 %v203, %v86
      %v216 = vmul.f32 %v206, %v87
      %v217 = vadd.f32 %v214, %v215
      %v218 = vadd.f32 %v217, %v216
      %v219 = vrot.slane %v218, 4
      %v220 = vadd.f32 %v218, %v219
      %v221 = vrot.slane %v220, 2
      %v222 = vadd.f32 %v220, %v221
      %v223 = vrot.slane %v222, 1
      %v224 = vadd.f32 %v222, %v223
      %225 = vst [vmem:[#allocation10] sm:$0x1] %v224
      %v226 = vmul.f32 %v214, %v214
      %v227 = vmul.f32 %v215, %v215
      %v228 = vmul.f32 %v216, %v216
      %v229 = vadd.f32 %v226, %v227
      %v230 = vadd.f32 %v229, %v228
      %v231 = vrot.slane %v230, 4
      %v232 = vadd.f32 %v230, %v231
      %v233 = vrot.slane %v232, 2
      %v234 = vadd.f32 %v232, %v233
      %v235 = vrot.slane %v234, 1
      %v236 = vadd.f32 %v234, %v235
      %237 = vst [vmem:[#allocation12] sm:$0x1] %v236
    $region37: #{tpu_custom_call.1} parent=1 // pred_fallthru
      _
    // Predicated region
    $region38: #{tpu_custom_call.1} parent=1 // pred_check
      _
    $region39: #{tpu_custom_call.1} parent=1 // pred_check_branch
      %239 = sbr.rel (0) target = $region41
    $region40: #{tpu_custom_call.1} parent=1 // pred_region
      %241 = vsyncadd [#allocation5], 0
      %s242 = sshll.u32 [#allocation9], 4
      %s243 = int_to_ptr.vmem [resolvable:$true] %s242
      %s244 = sshll.u32 %s4, 4
      %s245 = int_to_ptr.hbm [resolvable:$true] %s244
      %250 = dma.vmem_to_hbm [thread:$0]  %s243, 192, %s245, [#allocation5], 64, 64, 4
    $region41: #{tpu_custom_call.1} parent=1 // pred_fallthru
      _
    // Predicated region
    $region42: #{tpu_custom_call.1} parent=1 // pred_check
      _
    $region43: #{tpu_custom_call.1} parent=1 // pred_check_branch
      %252 = sbr.rel (0) target = $region45
    $region44: #{tpu_custom_call.1} parent=1 // pred_region
      %254 = vsyncadd [#allocation11], 0
      %s256 = sshll.u32 [#allocation10], 4
      %s257 = int_to_ptr.vmem [resolvable:$true] %s256
      %s258 = sshll.u32 %s5, 4
      %s259 = int_to_ptr.hbm [resolvable:$true] %s258
      %261 = dma.vmem_to_hbm [thread:$0]  %s257, 16, %s259, [#allocation11]
    $region45: #{tpu_custom_call.1} parent=1 // pred_fallthru
      _
    // Predicated region
    $region46: #{tpu_custom_call.1} parent=1 // pred_check
      _
    $region47: #{tpu_custom_call.1} parent=1 // pred_check_branch
      %263 = sbr.rel (0) target = $region49
    $region48: #{tpu_custom_call.1} parent=1 // pred_region
      %265 = vsyncadd [#allocation11], 0
      %s267 = sshll.u32 [#allocation12], 4
      %s268 = int_to_ptr.vmem [resolvable:$true] %s267
      %s269 = sshll.u32 %s6, 4
      %s270 = int_to_ptr.hbm [resolvable:$true] %s269
      %272 = dma.vmem_to_hbm [thread:$0]  %s268, 16, %s270, [#allocation11]
    $region49: #{tpu_custom_call.1} parent=1 // pred_fallthru
      _
    // Predicated region
    $region50: #{tpu_custom_call.1} parent=1 // pred_check
      _
    $region51: #{tpu_custom_call.1} parent=1 // pred_check_branch
      %274 = sbr.rel (0) target = $region53
    $region52: #{tpu_custom_call.1} parent=1 // pred_region
      %276 = dma.done [#allocation5], 192
    $region53: #{tpu_custom_call.1} parent=1 // pred_fallthru
      _
    // Predicated region
    $region54: #{tpu_custom_call.1} parent=1 // pred_check
      _
    $region55: #{tpu_custom_call.1} parent=1 // pred_check_branch
      %278 = sbr.rel (0) target = $region57
    $region56: #{tpu_custom_call.1} parent=1 // pred_region
      %280 = dma.done [#allocation11], 16
    $region57: #{tpu_custom_call.1} parent=1 // pred_fallthru
      _
    // Predicated region
    $region58: #{tpu_custom_call.1} parent=1 // pred_check
      _
    $region59: #{tpu_custom_call.1} parent=1 // pred_check_branch
      %282 = sbr.rel (0) target = $region61
    $region60: #{tpu_custom_call.1} parent=1 // pred_region
      %284 = dma.done [#allocation11], 16
    $region61: #{tpu_custom_call.1} parent=1 // pred_fallthru
      _
    %285 = vsyncpa [#allocation4], 1
    %286 = vsyncpa [#allocation7], 1
    %287 = vsyncpa [#allocation5], 1
    %288 = vsyncpa [#allocation11], 1

</llo_original>
